<compile_context>
chip_gen: v7x
topology: tpu7x:2x2x1
jax: 0.10.0
libtpu: 0.0.40
codegen_flags: <defaults>
</compile_context>

<pallas_src>
import functools

import jax
import jax.numpy as jnp
from jax import lax
from jax.experimental import pallas as pl
from jax.experimental.pallas import tpu as pltpu


def _round_up(x: int, m: int) -> int:
    return ((x + m - 1) // m) * m


def _tpu_generation_and_vmem():
    """Best-effort TPU generation / physical-VMEM query (safe fallbacks)."""
    vmem = 64 << 20                      # conservative default: v7x per-TC VMEM
    try:
        vmem = int(pltpu.get_tpu_info().vmem_capacity_bytes)
    except Exception:                    # any failure -> conservative fallback
        pass
    kind = ""
    try:
        kind = jax.devices()[0].device_kind.lower()
    except Exception:
        pass
    if "v5 lite" in kind or "v5e" in kind or "v5lite" in kind:
        gen = "v5e"
    elif "v6" in kind:
        gen = "v6e"
    elif "v7" in kind:
        gen = "v7x"
    else:
        gen = "unknown"
    return gen, vmem


def _ffn_kernel(x_ref, gamma_ref, beta_ref, w1_ref, b1_ref, w2_ref, b2_ref,
                o_ref, xn_scr, acc_scr, *,
                eps: float, d_model: int, mask_cols: bool, approx_gelu: bool):
    k = pl.program_id(1)
    nk = pl.num_programs(1)

    # --- once per row tile: LayerNorm (f32) + accumulator seeded with b2 ---
    @pl.when(k == 0)
    def _init():
        x = x_ref[...].astype(jnp.float32)
        inv_d = 1.0 / d_model
        mean = jnp.sum(x, axis=-1, keepdims=True) * inv_d     # pads are 0: exact
        xc = x - mean
        if mask_cols:
            # d_model was zero-padded to a lane multiple: exclude the padded
            # columns from the variance.
            col = lax.broadcasted_iota(jnp.int32, x.shape, 1)
            xc = jnp.where(col < d_model, xc, 0.0)
        var = jnp.sum(xc * xc, axis=-1, keepdims=True) * inv_d
        xn = xc * lax.rsqrt(var + eps)
        xn = (xn * gamma_ref[...].astype(jnp.float32)
              + beta_ref[...].astype(jnp.float32))
        xn_scr[...] = xn.astype(xn_scr.dtype)          # MXU feed dtype (e.g. bf16)
        # Seed the accumulator with b2: saves a separate bias pass at finalize.
        acc_scr[...] = jnp.broadcast_to(b2_ref[...].astype(jnp.float32),
                                        acc_scr.shape)

    # --- per d_ff block: GELU(xn @ W1_blk + b1_blk) @ W2_blk, accumulate ---
    h = jnp.dot(xn_scr[...], w1_ref[...], preferred_element_type=jnp.float32)
    h = h + b1_ref[...].astype(jnp.float32)
    if approx_gelu:
        # tanh-approximate GELU: one EUP push (separate VLIW slot) per element.
        h = 0.5 * h * (1.0 + jnp.tanh(0.7978845608028654
                                      * (h + 0.044715 * h * h * h)))
    else:
        # Exact erf GELU (matches torch.nn.GELU() default).
        h = 0.5 * h * (1.0 + lax.erf(h * 0.7071067811865476))
    # Dropout(p=0.0) -> identity.
    acc_scr[...] += jnp.dot(h.astype(w2_ref.dtype), w2_ref[...],
                            preferred_element_type=jnp.float32)

    # --- last d_ff block: residual add (b2 already in acc), store ---
    @pl.when(k == nk - 1)
    def _finalize():
        o_ref[...] = (x_ref[...].astype(jnp.float32)
                      + acc_scr[...]).astype(o_ref.dtype)


def feed_forward_layer(x, gamma, beta, w1, b1, w2, b2, *,
                       eps: float = 1e-5,
                       tile_rows=None,
                       block_ff=None,
                       matmul_dtype=None,
                       approximate_gelu: bool = False):
    """x: (batch, seq, d_model) -> (batch, seq, d_model).

    matmul_dtype: dtype fed to the MXU (weights pre-cast in the wrapper,
    activations cast in-kernel); accumulation is always f32.  DEFAULTS TO
    bfloat16 FOR float32 INPUTS (full-rate MXU on v5e/v6e/v7x); pass
    matmul_dtype=jnp.float32 for a bit-faithful f32 pipeline.
    approximate_gelu: use the tanh GELU approximation (cheaper on the VPU).
    tile_rows / block_ff: override the generation-aware tiling heuristics.
    """
    B, S, d_model = x.shape
    d_ff = w1.shape[1]
    assert w1.shape == (d_model, d_ff) and w2.shape == (d_ff, d_model)
    assert b1.shape == (d_ff,) and b2.shape == (d_model,)
    assert gamma.shape == (d_model,) and beta.shape == (d_model,)

    if matmul_dtype is None:
        mm_dtype = (jnp.dtype(jnp.bfloat16) if x.dtype == jnp.float32
                    else jnp.dtype(x.dtype))
    else:
        mm_dtype = jnp.dtype(matmul_dtype)
    mm_itm = mm_dtype.itemsize
    x_itm = jnp.dtype(x.dtype).itemsize

    rows = B * S
    d_model_p = _round_up(d_model, 128)      # lane-dense stores, full MXU N dim
    d_ff_full = _round_up(d_ff, 128)

    gen, phys_vmem = _tpu_generation_and_vmem()
    vmem_cap = int(phys_vmem * 0.80)         # headroom for Mosaic internals

    def _vmem_needed(tr_, bf_, nw_):
        return (
            2 * tr_ * d_model_p * x_itm          # x tile (double-buffered)
            + 2 * tr_ * d_model_p * x_itm        # out tile (double-buffered)
            + nw_ * d_model_p * bf_ * mm_itm     # W1 block buffer(s)
            + nw_ * bf_ * d_model_p * mm_itm     # W2 block buffer(s)
            + 2 * bf_ * 4                        # b1 block
            + 6 * d_model_p * 4                  # gamma / beta / b2
            + tr_ * d_model_p * (mm_itm + 4)     # xn scratch + f32 accumulator
            + tr_ * bf_ * (4 + mm_itm)           # f32 h intermediate + mm cast
        )

    # Row-tile default per generation (blocked-path roofline: ~tile_rows FLOPs
    # per weight byte must exceed peak_flops / hbm_bw).
    if tile_rows is None:
        tile_rows = {"v5e": 512, "v6e": 1024, "v7x": 512}.get(gen, 512)
    tr = _round_up(max(int(tile_rows), 8), 8)
    tr = min(tr, _round_up(rows, 8))
    if gen == "v7x" and rows >= 16:
        # Keep >= 2 row tiles so the "parallel" axis shards across both TCs.
        tr = min(tr, _round_up((rows + 1) // 2, 8))

    if block_ff is None:
        # Weight-resident fast path: single k step; the W1/W2 block index is
        # constant across the grid, so each weight byte is DMA'd exactly once.
        tr_res = tr
        while tr_res > 128 and _vmem_needed(tr_res, d_ff_full, 2) > vmem_cap:
            tr_res = _round_up(tr_res // 2, 8)
        if _vmem_needed(tr_res, d_ff_full, 2) <= vmem_cap:
            tr, bf = tr_res, d_ff_full
        else:
            bf = min(512, d_ff_full)     # blocked path: grow rows, not d_ff
    else:
        bf = min(_round_up(int(block_ff), 128), d_ff_full)

    # Ensure the chosen tiles fit the per-generation VMEM budget.
    while tr > 128 and _vmem_needed(tr, bf, 2) > vmem_cap:
        tr = _round_up(tr // 2, 8)
    while bf > 128 and _vmem_needed(tr, bf, 2) > vmem_cap:
        bf = max(128, _round_up(bf // 2, 128))

    d_ff_p = _round_up(d_ff, bf)
    nk = d_ff_p // bf
    rows_p = _round_up(rows, tr)
    grid = (rows_p // tr, nk)

    # Blocked path: deeper weight prefetch hides the bursty DMA at the
    # k-wraparound / row-tile transition (if the extra buffer still fits).
    n_wbuf = 2
    if nk >= 3 and _vmem_needed(tr, bf, 3) <= vmem_cap:
        n_wbuf = 3

    # --- pad & cast operands (all padding is exact: zeros contribute zero) ---
    x2d = x.reshape(rows, d_model)
    if rows_p != rows or d_model_p != d_model:
        x2d = jnp.pad(x2d, ((0, rows_p - rows), (0, d_model_p - d_model)))

    w1p, b1p, w2p, b2p, gp, bp = w1, b1, w2, b2, gamma, beta
    if d_model_p != d_model:
        dpad = d_model_p - d_model
        w1p = jnp.pad(w1p, ((0, dpad), (0, 0)))
        w2p = jnp.pad(w2p, ((0, 0), (0, dpad)))
        b2p = jnp.pad(b2p, ((0, dpad),))
        gp = jnp.pad(gp, ((0, dpad),))       # zero gamma/beta on padded lanes
        bp = jnp.pad(bp, ((0, dpad),))
    if d_ff_p != d_ff:
        fpad = d_ff_p - d_ff
        w1p = jnp.pad(w1p, ((0, 0), (0, fpad)))
        b1p = jnp.pad(b1p, ((0, fpad),))
        w2p = jnp.pad(w2p, ((0, fpad), (0, 0)))

    w1p = w1p.astype(mm_dtype)               # cast once here, not per grid step
    w2p = w2p.astype(mm_dtype)
    gamma2d = gp.reshape(1, d_model_p).astype(jnp.float32)
    beta2d = bp.reshape(1, d_model_p).astype(jnp.float32)
    b1_2d = b1p.reshape(1, d_ff_p).astype(jnp.float32)
    b2_2d = b2p.reshape(1, d_model_p).astype(jnp.float32)

    vmem_limit = int(min(max(_vmem_needed(tr, bf, n_wbuf) + (4 << 20), 32 << 20),
                         vmem_cap))

    weight_passes = 1 if nk == 1 else grid[0]
    cost = pl.CostEstimate(
        flops=4 * rows_p * d_model_p * d_ff_p,            # two matmuls
        transcendentals=rows_p * d_ff_p,                  # erf / tanh
        bytes_accessed=int(2 * rows_p * d_model_p * x_itm
                           + (w1p.size + w2p.size) * mm_itm * weight_passes),
    )

    def _wspec(shape, index_map):
        if n_wbuf != 2 and hasattr(pl, "Buffered"):
            try:
                return pl.BlockSpec(shape, index_map,
                                    pipeline_mode=pl.Buffered(n_wbuf))
            except TypeError:
                pass
        return pl.BlockSpec(shape, index_map)

    kernel = functools.partial(_ffn_kernel, eps=eps, d_model=d_model,
                               mask_cols=(d_model_p != d_model),
                               approx_gelu=approximate_gelu)

    out2d = pl.pallas_call(
        kernel,
        out_shape=jax.ShapeDtypeStruct((rows_p, d_model_p), x.dtype),
        grid_spec=pltpu.PrefetchScalarGridSpec(
            num_scalar_prefetch=0,
            grid=grid,
            in_specs=[
                pl.BlockSpec((tr, d_model_p), lambda i, k: (i, 0)),      # x rows
                pl.BlockSpec((1, d_model_p), lambda i, k: (0, 0)),       # gamma
                pl.BlockSpec((1, d_model_p), lambda i, k: (0, 0)),       # beta
                _wspec((d_model_p, bf), lambda i, k: (0, k)),            # W1 blk
                pl.BlockSpec((1, bf), lambda i, k: (0, k)),              # b1 blk
                _wspec((bf, d_model_p), lambda i, k: (k, 0)),            # W2 blk
                pl.BlockSpec((1, d_model_p), lambda i, k: (0, 0)),       # b2
            ],
            out_specs=pl.BlockSpec((tr, d_model_p), lambda i, k: (i, 0)),
            scratch_shapes=[
                pltpu.VMEM((tr, d_model_p), mm_dtype),     # xn (post-LN)
                pltpu.VMEM((tr, d_model_p), jnp.float32),  # f32 accumulator
            ],
        ),
        compiler_params=pltpu.CompilerParams(
            dimension_semantics=("parallel", "arbitrary"),
            vmem_limit_bytes=vmem_limit),
        cost_estimate=cost,
    )(x2d, gamma2d, beta2d, w1p, b1_2d, w2p, b2_2d)

    if rows_p != rows or d_model_p != d_model:
        out2d = out2d[:rows, :d_model]
    return out2d.reshape(B, S, d_model)


def _reference(x, gamma, beta, w1, b1, w2, b2, eps=1e-5, approximate_gelu=False):
    xf = x.astype(jnp.float32)
    mean = jnp.mean(xf, axis=-1, keepdims=True)
    var = jnp.mean((xf - mean) ** 2, axis=-1, keepdims=True)
    xn = (xf - mean) * lax.rsqrt(var + eps) * gamma + beta
    h = xn @ w1 + b1
    if approximate_gelu:
        h = 0.5 * h * (1.0 + jnp.tanh(0.7978845608028654
                                      * (h + 0.044715 * h ** 3)))
    else:
        h = 0.5 * h * (1.0 + lax.erf(h / jnp.sqrt(2.0)))
    y = h @ w2 + b2
    return (xf + y).astype(x.dtype)


if __name__ == "__main__":
    # Small shapes implied by the module's forward: (batch, seq, d_model).
    B, S, d_model, d_ff = 2, 8, 32, 128

    key = jax.random.PRNGKey(0)
    kx, kw1, kb1, kw2, kb2, kx2, kw3, kw4 = jax.random.split(key, 8)

    x = jax.random.normal(kx, (B, S, d_model), dtype=jnp.float32)
    w1 = jax.random.normal(kw1, (d_model, d_ff), dtype=jnp.float32) * 0.05
    b1 = jax.random.normal(kb1, (d_ff,), dtype=jnp.float32) * 0.01
    w2 = jax.random.normal(kw2, (d_ff, d_model), dtype=jnp.float32) * 0.05
    b2 = jax.random.normal(kb2, (d_model,), dtype=jnp.float32) * 0.01
    gamma = jnp.ones((d_model,), dtype=jnp.float32)
    beta = jnp.zeros((d_model,), dtype=jnp.float32)

    ref = _reference(x, gamma, beta, w1, b1, w2, b2)

    # 1) f32-MXU path (bit-faithful to the f32 reference).
    out = feed_forward_layer(x, gamma, beta, w1, b1, w2, b2,
                             matmul_dtype=jnp.float32)
    out = jax.block_until_ready(out)
    assert out.shape == (B, S, d_model)
    assert jnp.allclose(out, ref, atol=1e-4, rtol=1e-4), "f32 path mismatch"

    # 2) Default path: bf16 MXU feeds, f32 LN/GELU/accumulation.
    out_bf16 = jax.block_until_ready(
        feed_forward_layer(x, gamma, beta, w1, b1, w2, b2))
    assert jnp.allclose(out_bf16, ref, atol=5e-2, rtol=5e-2), "bf16 path mismatch"

    # 3) tanh-approximate GELU option (compared against a tanh reference).
    ref_tanh = _reference(x, gamma, beta, w1, b1, w2, b2, approximate_gelu=True)
    out_tanh = jax.block_until_ready(
        feed_forward_layer(x, gamma, beta, w1, b1, w2, b2,
                           matmul_dtype=jnp.float32, approximate_gelu=True))
    assert jnp.allclose(out_tanh, ref_tanh, atol=1e-4, rtol=1e-4), \
        "tanh GELU path mismatch"

    # 4) Lane-aligned d_model (no column padding), exercises the unmasked LN
    #    path and the weight-resident fast path at a slightly larger shape.
    d_model2, d_ff2, S2 = 128, 512, 64
    x2 = jax.random.normal(kx2, (B, S2, d_model2), dtype=jnp.float32)
    w1b = jax.random.normal(kw3, (d_model2, d_ff2), dtype=jnp.float32) * 0.05
    w2b = jax.random.normal(kw4, (d_ff2, d_model2), dtype=jnp.float32) * 0.05
    b1b = jnp.zeros((d_ff2,), jnp.float32)
    b2b = jnp.zeros((d_model2,), jnp.float32)
    g2 = jnp.ones((d_model2,), jnp.float32)
    bt2 = jnp.zeros((d_model2,), jnp.float32)
    ref2 = _reference(x2, g2, bt2, w1b, b1b, w2b, b2b)
    out2 = jax.block_until_ready(
        feed_forward_layer(x2, g2, bt2, w1b, b1b, w2b, b2b,
                           matmul_dtype=jnp.float32))
    assert jnp.allclose(out2, ref2, atol=1e-4, rtol=1e-4), "d_model=128 mismatch"

    print("KERNEL_OK")
</pallas_src>

<mosaic_0001>
module attributes {stable_mosaic.version = 11 : i64} {
  func.func @_ffn_kernel(%arg0: i32, %arg1: i32, %arg2: memref<16x128xf32, #tpu.memory_space<vmem>>, %arg3: memref<1x128xf32, #tpu.memory_space<vmem>>, %arg4: memref<1x128xf32, #tpu.memory_space<vmem>>, %arg5: memref<128x128xf32, #tpu.memory_space<vmem>>, %arg6: memref<1x128xf32, #tpu.memory_space<vmem>>, %arg7: memref<128x128xf32, #tpu.memory_space<vmem>>, %arg8: memref<1x128xf32, #tpu.memory_space<vmem>>, %arg9: memref<16x128xf32, #tpu.memory_space<vmem>>, %arg10: memref<16x128xf32, #tpu.memory_space<vmem>>, %arg11: memref<16x128xf32, #tpu.memory_space<vmem>>) attributes {dimension_semantics = [#tpu.dimension_semantics<parallel>, #tpu.dimension_semantics<arbitrary>], iteration_bounds = array<i64: 1, 1>, scalar_prefetch = 0 : i64, scratch_operands = 2 : i64, tpu.core_type = #tpu.core_type<tc>, window_params = [{transform_indices = @transform_0, window_bounds = array<i64: 16, 128>}, {pipeline_mode = #tpu.pipeline_mode<synchronous>, transform_indices = @transform_1, window_bounds = array<i64: 1, 128>}, {pipeline_mode = #tpu.pipeline_mode<synchronous>, transform_indices = @transform_2, window_bounds = array<i64: 1, 128>}, {transform_indices = @transform_3, window_bounds = array<i64: 128, 128>}, {transform_indices = @transform_4, window_bounds = array<i64: 1, 128>}, {transform_indices = @transform_5, window_bounds = array<i64: 128, 128>}, {pipeline_mode = #tpu.pipeline_mode<synchronous>, transform_indices = @transform_6, window_bounds = array<i64: 1, 128>}, {transform_indices = @transform_7, window_bounds = array<i64: 16, 128>}]} {
    %c0_i32 = arith.constant 0 : i32
    %0 = arith.cmpi eq, %arg1, %c0_i32 : i32
    %1 = arith.extui %0 : i1 to i32
    %c0_i32_0 = arith.constant 0 : i32
    %2 = arith.cmpi ne, %1, %c0_i32_0 : i32
    scf.if %2 {
      %c0_18 = arith.constant 0 : index
      %c0_19 = arith.constant 0 : index
      %25 = vector.load %arg2[%c0_18, %c0_19] : memref<16x128xf32, #tpu.memory_space<vmem>>, vector<16x128xf32>
      %cst_20 = arith.constant dense<0.000000e+00> : vector<16xf32>
      %26 = vector.multi_reduction <add>, %25, %cst_20 [1] : vector<16x128xf32> to vector<16xf32>
      %27 = vector.shape_cast %26 : vector<16xf32> to vector<16x1xf32>
      %cst_21 = arith.constant 3.125000e-02 : f32
      %28 = vector.broadcast %cst_21 : f32 to vector<16x1xf32>
      %29 = arith.mulf %27, %28 : vector<16x1xf32>
      %30 = vector.broadcast %29 : vector<16x1xf32> to vector<16x128xf32>
      %31 = arith.subf %25, %30 : vector<16x128xf32>
      %32 = tpu.iota {dimensions = array<i32: 1>} : vector<16x128xi32>
      %c32_i32 = arith.constant 32 : i32
      %33 = vector.broadcast %c32_i32 : i32 to vector<16x128xi32>
      %34 = arith.cmpi slt, %32, %33 : vector<16x128xi32>
      %cst_22 = arith.constant 0.000000e+00 : f32
      %35 = vector.broadcast %cst_22 : f32 to vector<16x128xf32>
      %36 = arith.select %34, %31, %35 : vector<16x128xi1>, vector<16x128xf32>
      %37 = arith.mulf %36, %36 : vector<16x128xf32>
      %cst_23 = arith.constant dense<0.000000e+00> : vector<16xf32>
      %38 = vector.multi_reduction <add>, %37, %cst_23 [1] : vector<16x128xf32> to vector<16xf32>
      %39 = vector.shape_cast %38 : vector<16xf32> to vector<16x1xf32>
      %cst_24 = arith.constant 3.125000e-02 : f32
      %40 = vector.broadcast %cst_24 : f32 to vector<16x1xf32>
      %41 = arith.mulf %39, %40 : vector<16x1xf32>
      %cst_25 = arith.constant 9.99999974E-6 : f32
      %42 = vector.broadcast %cst_25 : f32 to vector<16x1xf32>
      %43 = arith.addf %41, %42 : vector<16x1xf32>
      %44 = math.rsqrt %43 : vector<16x1xf32>
      %45 = vector.broadcast %44 : vector<16x1xf32> to vector<16x128xf32>
      %46 = arith.mulf %36, %45 : vector<16x128xf32>
      %c0_26 = arith.constant 0 : index
      %c0_27 = arith.constant 0 : index
      %47 = vector.load %arg3[%c0_26, %c0_27] : memref<1x128xf32, #tpu.memory_space<vmem>>, vector<1x128xf32>
      %48 = vector.broadcast %47 : vector<1x128xf32> to vector<16x128xf32>
      %49 = arith.mulf %46, %48 : vector<16x128xf32>
      %c0_28 = arith.constant 0 : index
      %c0_29 = arith.constant 0 : index
      %50 = vector.load %arg4[%c0_28, %c0_29] : memref<1x128xf32, #tpu.memory_space<vmem>>, vector<1x128xf32>
      %51 = vector.broadcast %50 : vector<1x128xf32> to vector<16x128xf32>
      %52 = arith.addf %49, %51 : vector<16x128xf32>
      %c0_30 = arith.constant 0 : index
      %c0_31 = arith.constant 0 : index
      %53 = vector.load %arg10[%c0_30, %c0_31] : memref<16x128xf32, #tpu.memory_space<vmem>>, vector<16x128xf32>
      tpu.vector_store %arg10[%c0_30, %c0_31], %52 {strides = array<i32>} : memref<16x128xf32, #tpu.memory_space<vmem>>, vector<16x128xf32>,
      %c0_32 = arith.constant 0 : index
      %c0_33 = arith.constant 0 : index
      %54 = vector.load %arg8[%c0_32, %c0_33] : memref<1x128xf32, #tpu.memory_space<vmem>>, vector<1x128xf32>
      %55 = vector.shape_cast %54 : vector<1x128xf32> to vector<1x128xf32>
      %56 = vector.broadcast %55 : vector<1x128xf32> to vector<16x128xf32>
      %c0_34 = arith.constant 0 : index
      %c0_35 = arith.constant 0 : index
      %57 = vector.load %arg11[%c0_34, %c0_35] : memref<16x128xf32, #tpu.memory_space<vmem>>, vector<16x128xf32>
      tpu.vector_store %arg11[%c0_34, %c0_35], %56 {strides = array<i32>} : memref<16x128xf32, #tpu.memory_space<vmem>>, vector<16x128xf32>,
    } else {
    }
    %c0 = arith.constant 0 : index
    %c0_1 = arith.constant 0 : index
    %3 = vector.load %arg10[%c0, %c0_1] : memref<16x128xf32, #tpu.memory_space<vmem>>, vector<16x128xf32>
    %c0_2 = arith.constant 0 : index
    %c0_3 = arith.constant 0 : index
    %4 = vector.load %arg5[%c0_2, %c0_3] : memref<128x128xf32, #tpu.memory_space<vmem>>, vector<128x128xf32>
    %cst = arith.constant dense<0.000000e+00> : vector<16x128xf32>
    %5 = tpu.matmul %3, %4, %cst {dimension_numbers = #tpu.dot_dimension_numbers<[1], [0], [0], [1], [0, 0, 1, 1], [], []>} : vector<16x128xf32>, vector<128x128xf32>, vector<16x128xf32> -> vector<16x128xf32>
    %c0_4 = arith.constant 0 : index
    %c0_5 = arith.constant 0 : index
    %6 = vector.load %arg6[%c0_4, %c0_5] : memref<1x128xf32, #tpu.memory_space<vmem>>, vector<1x128xf32>
    %7 = vector.broadcast %6 : vector<1x128xf32> to vector<16x128xf32>
    %8 = arith.addf %5, %7 : vector<16x128xf32>
    %cst_6 = arith.constant 5.000000e-01 : f32
    %9 = vector.broadcast %cst_6 : f32 to vector<16x128xf32>
    %10 = arith.mulf %9, %8 : vector<16x128xf32>
    %cst_7 = arith.constant 0.707106769 : f32
    %11 = vector.broadcast %cst_7 : f32 to vector<16x128xf32>
    %12 = arith.mulf %8, %11 : vector<16x128xf32>
    %13 = math.erf %12 : vector<16x128xf32>
    %cst_8 = arith.constant 1.000000e+00 : f32
    %14 = vector.broadcast %cst_8 : f32 to vector<16x128xf32>
    %15 = arith.addf %14, %13 : vector<16x128xf32>
    %16 = arith.mulf %10, %15 : vector<16x128xf32>
    %c0_9 = arith.constant 0 : index
    %c0_10 = arith.constant 0 : index
    %17 = vector.load %arg11[%c0_9, %c0_10] : memref<16x128xf32, #tpu.memory_space<vmem>>, vector<16x128xf32>
    %c0_11 = arith.constant 0 : index
    %c0_12 = arith.constant 0 : index
    %18 = vector.load %arg7[%c0_11, %c0_12] : memref<128x128xf32, #tpu.memory_space<vmem>>, vector<128x128xf32>
    %cst_13 = arith.constant dense<0.000000e+00> : vector<16x128xf32>
    %19 = tpu.matmul %16, %18, %cst_13 {dimension_numbers = #tpu.dot_dimension_numbers<[1], [0], [0], [1], [0, 0, 1, 1], [], []>} : vector<16x128xf32>, vector<128x128xf32>, vector<16x128xf32> -> vector<16x128xf32>
    %20 = arith.addf %17, %19 : vector<16x128xf32>
    %c0_14 = arith.constant 0 : index
    %c0_15 = arith.constant 0 : index
    %21 = vector.load %arg11[%c0_14, %c0_15] : memref<16x128xf32, #tpu.memory_space<vmem>>, vector<16x128xf32>
    tpu.vector_store %arg11[%c0_14, %c0_15], %20 {strides = array<i32>} : memref<16x128xf32, #tpu.memory_space<vmem>>, vector<16x128xf32>,
    %c0_i32_16 = arith.constant 0 : i32
    %22 = arith.cmpi eq, %arg1, %c0_i32_16 : i32
    %23 = arith.extui %22 : i1 to i32
    %c0_i32_17 = arith.constant 0 : i32
    %24 = arith.cmpi ne, %23, %c0_i32_17 : i32
    scf.if %24 {
      %c0_18 = arith.constant 0 : index
      %c0_19 = arith.constant 0 : index
      %25 = vector.load %arg2[%c0_18, %c0_19] : memref<16x128xf32, #tpu.memory_space<vmem>>, vector<16x128xf32>
      %c0_20 = arith.constant 0 : index
      %c0_21 = arith.constant 0 : index
      %26 = vector.load %arg11[%c0_20, %c0_21] : memref<16x128xf32, #tpu.memory_space<vmem>>, vector<16x128xf32>
      %27 = arith.addf %25, %26 : vector<16x128xf32>
      %c0_22 = arith.constant 0 : index
      %c0_23 = arith.constant 0 : index
      %28 = vector.load %arg9[%c0_22, %c0_23] : memref<16x128xf32, #tpu.memory_space<vmem>>, vector<16x128xf32>
      tpu.vector_store %arg9[%c0_22, %c0_23], %27 {strides = array<i32>} : memref<16x128xf32, #tpu.memory_space<vmem>>, vector<16x128xf32>,
    } else {
    }
    return
  }
  func.func @transform_0(%arg0: i32, %arg1: i32) -> (i32, i32) {
    %c0_i32 = arith.constant 0 : i32
    %c0_i32_0 = arith.constant 0 : i32
    return %arg0, %c0_i32 : i32, i32
  }
  func.func @transform_1(%arg0: i32, %arg1: i32) -> (i32, i32) {
    %c0_i32 = arith.constant 0 : i32
    %c0_i32_0 = arith.constant 0 : i32
    %c0_i32_1 = arith.constant 0 : i32
    return %c0_i32, %c0_i32_0 : i32, i32
  }
  func.func @transform_2(%arg0: i32, %arg1: i32) -> (i32, i32) {
    %c0_i32 = arith.constant 0 : i32
    %c0_i32_0 = arith.constant 0 : i32
    %c0_i32_1 = arith.constant 0 : i32
    return %c0_i32, %c0_i32_0 : i32, i32
  }
  func.func @transform_3(%arg0: i32, %arg1: i32) -> (i32, i32) {
    %c0_i32 = arith.constant 0 : i32
    %c0_i32_0 = arith.constant 0 : i32
    return %c0_i32, %arg1 : i32, i32
  }
  func.func @transform_4(%arg0: i32, %arg1: i32) -> (i32, i32) {
    %c0_i32 = arith.constant 0 : i32
    %c0_i32_0 = arith.constant 0 : i32
    return %c0_i32, %arg1 : i32, i32
  }
  func.func @transform_5(%arg0: i32, %arg1: i32) -> (i32, i32) {
    %c0_i32 = arith.constant 0 : i32
    %c0_i32_0 = arith.constant 0 : i32
    return %arg1, %c0_i32 : i32, i32
  }
  func.func @transform_6(%arg0: i32, %arg1: i32) -> (i32, i32) {
    %c0_i32 = arith.constant 0 : i32
    %c0_i32_0 = arith.constant 0 : i32
    %c0_i32_1 = arith.constant 0 : i32
    return %c0_i32, %c0_i32_0 : i32, i32
  }
  func.func @transform_7(%arg0: i32, %arg1: i32) -> (i32, i32) {
    %c0_i32 = arith.constant 0 : i32
    %c0_i32_0 = arith.constant 0 : i32
    return %arg0, %c0_i32 : i32, i32
  }
}

</mosaic_0001>

<llo_original>
// kernel: tpu_custom_call.1
$region0: #{tpu_custom_call.1}
  #allocation0 [shape = 'u32[]', space=smem, size = 0x4, offset = 0x4, fixed_abs, tag = 'smem constant byte address 0x4 - core index']
  #allocation1 [shape = 'u32[144,128]{1,0:T(1,128)}', space=vmem, size = 0x12000, scoped, tag = 'internal scratch']
  #allocation2 [shape = 'f32[16,128]{1,0:T(8,128)}', space=vmem, size = 0x2000, scoped, tag = 'scratch operand']
  #allocation3 [shape = 'f32[16,128]{1,0:T(8,128)}', space=vmem, size = 0x2000, scoped, tag = 'scratch operand']
  %s0 = inlined_call_operand.hbm [shape: f32[16,128], index: 0, kind: input, shape index: {}]
  %s1 = inlined_call_operand.vmem [shape: f32[1,128], index: 1, kind: input, shape index: {}]
  %s2 = inlined_call_operand.vmem [shape: f32[1,128], index: 2, kind: input, shape index: {}]
  %s3 = inlined_call_operand.hbm [shape: f32[128,128], index: 3, kind: input, shape index: {}]
  %s4 = inlined_call_operand.vmem [shape: f32[1,128], index: 4, kind: input, shape index: {}]
  %s5 = inlined_call_operand.hbm [shape: f32[128,128], index: 5, kind: input, shape index: {}]
  %s6 = inlined_call_operand.vmem [shape: f32[1,128], index: 6, kind: input, shape index: {}]
  %s7 = inlined_call_operand.hbm [shape: f32[16,128], index: 7, kind: output, shape index: {}]
  %s8 = sld [smem:[#allocation0]]
  $region58: #{tpu_custom_call.1} parent=0
    _
  %s10 = ssub.s32 1, %s8
  %s11 = scalar_select 0, %s10, %s8
  $region1: #{tpu_custom_call.1} parent=0
    #allocation4 [shape = 'u8[8192]{0}', space=vmem, size = 0x2000, scoped, tag = 'input window, operand 0, single buffered']
    #allocation5 [shape = 's32[1]{0}', space=sflag, size = 0x4, scoped, tag = 'scoped memory for tpu_custom_call.1']
    #allocation6 [shape = 's32[1]{0}', space=sflag, size = 0x4, scoped, tag = 'scoped memory for tpu_custom_call.1']
    #allocation7 [shape = 'u8[65536]{0}', space=vmem, size = 0x10000, scoped, tag = 'input window, operand 3, single buffered']
    #allocation8 [shape = 's32[1]{0}', space=sflag, size = 0x4, scoped, tag = 'scoped memory for tpu_custom_call.1']
    #allocation9 [shape = 'u8[65536]{0}', space=vmem, size = 0x10000, scoped, tag = 'input window, operand 5, single buffered']
    #allocation10 [shape = 'u8[8192]{0}', space=vmem, size = 0x2000, scoped, tag = 'output window, operand 0, single buffered']
    %12 = vsyncpa [#allocation5], 0
    %13 = vsyncpa [#allocation8], 0
    %14 = vsyncpa [#allocation6], 0
    // Predicated region
    $region2: #{tpu_custom_call.1} parent=1 // pred_check
      _
    $region3: #{tpu_custom_call.1} parent=1 // pred_check_branch
      %16 = sbr.rel (0) target = $region5
    $region4: #{tpu_custom_call.1} parent=1 // pred_region
      %s18 = ssub.s32 256, 256
      %19 = vsyncadd [#allocation5], %s18
      %s20 = sshll.u32 [#allocation4], 4
      %s21 = int_to_ptr.vmem [resolvable:$true] %s20
      %26 = dma.hbm_to_vmem [thread:$0]  %s0, 256, %s21, [#allocation5], 128, 128, 8
    $region5: #{tpu_custom_call.1} parent=1 // pred_fallthru
      _
    // Predicated region
    $region6: #{tpu_custom_call.1} parent=1 // pred_check
      _
    $region7: #{tpu_custom_call.1} parent=1 // pred_check_branch
      %28 = sbr.rel (0) target = $region9
    $region8: #{tpu_custom_call.1} parent=1 // pred_region
      _
    $region9: #{tpu_custom_call.1} parent=1 // pred_fallthru
      _
    // Predicated region
    $region10: #{tpu_custom_call.1} parent=1 // pred_check
      _
    $region11: #{tpu_custom_call.1} parent=1 // pred_check_branch
      %30 = sbr.rel (0) target = $region13
    $region12: #{tpu_custom_call.1} parent=1 // pred_region
      _
    $region13: #{tpu_custom_call.1} parent=1 // pred_fallthru
      _
    // Predicated region
    $region14: #{tpu_custom_call.1} parent=1 // pred_check
      _
    $region15: #{tpu_custom_call.1} parent=1 // pred_check_branch
      %32 = sbr.rel (0) target = $region17
    $region16: #{tpu_custom_call.1} parent=1 // pred_region
      %s34 = ssub.s32 2048, 2048
      %35 = vsyncadd [#allocation8], %s34
      %s36 = sshll.u32 [#allocation7], 4
      %s37 = int_to_ptr.vmem [resolvable:$true] %s36
      %42 = dma.hbm_to_vmem [thread:$0]  %s3, 2048, %s37, [#allocation8], 128, 128, 8
    $region17: #{tpu_custom_call.1} parent=1 // pred_fallthru
      _
    // Predicated region
    $region18: #{tpu_custom_call.1} parent=1 // pred_check
      _
    $region19: #{tpu_custom_call.1} parent=1 // pred_check_branch
      %44 = sbr.rel (0) target = $region21
    $region20: #{tpu_custom_call.1} parent=1 // pred_region
      _
    $region21: #{tpu_custom_call.1} parent=1 // pred_fallthru
      _
    // Predicated region
    $region22: #{tpu_custom_call.1} parent=1 // pred_check
      _
    $region23: #{tpu_custom_call.1} parent=1 // pred_check_branch
      %46 = sbr.rel (0) target = $region25
    $region24: #{tpu_custom_call.1} parent=1 // pred_region
      %s48 = ssub.s32 2048, 2048
      %49 = vsyncadd [#allocation8], %s48
      %s50 = sshll.u32 [#allocation9], 4
      %s51 = int_to_ptr.vmem [resolvable:$true] %s50
      %56 = dma.hbm_to_vmem [thread:$0]  %s5, 2048, %s51, [#allocation8], 128, 128, 8
    $region25: #{tpu_custom_call.1} parent=1 // pred_fallthru
      _
    // Predicated region
    $region26: #{tpu_custom_call.1} parent=1 // pred_check
      _
    $region27: #{tpu_custom_call.1} parent=1 // pred_check_branch
      %58 = sbr.rel (0) target = $region29
    $region28: #{tpu_custom_call.1} parent=1 // pred_region
      _
    $region29: #{tpu_custom_call.1} parent=1 // pred_fallthru
      _
    // Predicated region
    $region30: #{tpu_custom_call.1} parent=1 // pred_check
      _
    $region31: #{tpu_custom_call.1} parent=1 // pred_check_branch
      %60 = sbr.rel (0) target = $region33
    $region32: #{tpu_custom_call.1} parent=1 // pred_region
      %61 = dma.done [#allocation5], 256
    $region33: #{tpu_custom_call.1} parent=1 // pred_fallthru
      _
    // Predicated region
    $region34: #{tpu_custom_call.1} parent=1 // pred_check
      _
    $region35: #{tpu_custom_call.1} parent=1 // pred_check_branch
      %63 = sbr.rel (0) target = $region37
    $region36: #{tpu_custom_call.1} parent=1 // pred_region
      %64 = dma.done [#allocation8], 2048
    $region37: #{tpu_custom_call.1} parent=1 // pred_fallthru
      _
    // Predicated region
    $region38: #{tpu_custom_call.1} parent=1 // pred_check
      _
    $region39: #{tpu_custom_call.1} parent=1 // pred_check_branch
      %66 = sbr.rel (0) target = $region41
    $region40: #{tpu_custom_call.1} parent=1 // pred_region
      %67 = dma.done [#allocation8], 2048
    $region41: #{tpu_custom_call.1} parent=1 // pred_fallthru
      _
    %p68 = scmp.eq.s32.totalorder 0, 0
    // Predicated region
    $region42: #{tpu_custom_call.1} parent=1 // pred_check
      %p69 = pneg %p68
    $region43: #{tpu_custom_call.1} parent=1 // pred_check_branch
      %71 = sbr.rel (%p69) target = $region45
    $region44: #{tpu_custom_call.1} parent=1 // pred_region
      %v72 = vld [vmem:[#allocation4] sm:$0xff]
      %v73 = vld [vmem:[#allocation4 + $0x8] sm:$0xff]
      %74 = vadd.xlane.f32.xlu0 %v72
      %v75 = vpop.xlane.xlu0 %74
      %76 = vadd.xlane.f32.xlu0 %v73
      %v77 = vpop.xlane.xlu0 %76
      %v78 = vmul.f32 %v75, 0.03125
      %v79 = vmul.f32 %v77, 0.03125
      %v80 = vsub.f32 %v72, %v78
      %v81 = vsub.f32 %v73, %v79
      %v82 = vlaneseq
      %v83 = vand.u32 %v82, 127
      %vm84 = vcmp.lt.s32.totalorder %v83, 32
      %v85 = vsel %vm84, %v80, 0.0
      %v86 = vsel %vm84, %v81, 0.0
      %v87 = vmul.f32 %v85, %v85
      %v88 = vmul.f32 %v86, %v86
      %89 = vadd.xlane.f32.xlu0 %v87
      %v90 = vpop.xlane.xlu0 %89
      %91 = vadd.xlane.f32.xlu0 %v88
      %v92 = vpop.xlane.xlu0 %91
      %v93 = vmul.f32 %v90, 0.03125
      %v94 = vmul.f32 %v92, 0.03125
      %v95 = vadd.f32 %v93, 1e-05
      %v96 = vadd.f32 %v94, 1e-05
      %v97 = vrsqrt.pop %v95
      %v98 = vrsqrt.pop %v96
      %v99 = vmul.f32 %v85, %v97
      %v100 = vmul.f32 %v86, %v98
      %v101 = vld [vmem:[%s1] sm:$0x1]
      %v103 = vlaneseq
      %v104 = vshrl.u32 %v103, 7
      %v105 = vsub.s32 0, %v104
      %v106 = vrot.slane %v101, %v105
      %v108 = vmul.f32 %v99, %v106
      %v109 = vmul.f32 %v100, %v106
      %v110 = vld [vmem:[%s2] sm:$0x1]
      %v112 = vlaneseq
      %v113 = vshrl.u32 %v112, 7
      %v114 = vsub.s32 0, %v113
      %v115 = vrot.slane %v110, %v114
      %v117 = vadd.f32 %v108, %v115
      %v118 = vadd.f32 %v109, %v115
      %119 = vst [vmem:[#allocation2] sm:$0xff] %v117
      %120 = vst [vmem:[#allocation2 + $0x8] sm:$0xff] %v118
      %v121 = vld [vmem:[%s6] sm:$0x1]
      %v123 = vlaneseq
      %v124 = vshrl.u32 %v123, 7
      %v125 = vsub.s32 0, %v124
      %v126 = vrot.slane %v121, %v125
      %128 = vst [vmem:[#allocation3] sm:$0xff] %v126
      %129 = vst [vmem:[#allocation3 + $0x8] sm:$0xff] %v126
    $region45: #{tpu_custom_call.1} parent=1 // pred_fallthru
      _
    %v130 = vld [vmem:[#allocation2] sm:$0xff]
    %v131 = vld [vmem:[#allocation2 + $0x8] sm:$0xff]
    %v132 = vld [vmem:[#allocation7] sm:$0xff]
    %v133 = vld [vmem:[#allocation7 + $0x8] sm:$0xff]
    %v134 = vld [vmem:[#allocation7 + $0x10] sm:$0xff]
    %v135 = vld [vmem:[#allocation7 + $0x18] sm:$0xff]
    %v136 = vld [vmem:[#allocation7 + $0x20] sm:$0xff]
    %v137 = vld [vmem:[#allocation7 + $0x28] sm:$0xff]
    %v138 = vld [vmem:[#allocation7 + $0x30] sm:$0xff]
    %v139 = vld [vmem:[#allocation7 + $0x38] sm:$0xff]
    %v140 = vld [vmem:[#allocation7 + $0x40] sm:$0xff]
    %v141 = vld [vmem:[#allocation7 + $0x48] sm:$0xff]
    %v142 = vld [vmem:[#allocation7 + $0x50] sm:$0xff]
    %v143 = vld [vmem:[#allocation7 + $0x58] sm:$0xff]
    %v144 = vld [vmem:[#allocation7 + $0x60] sm:$0xff]
    %v145 = vld [vmem:[#allocation7 + $0x68] sm:$0xff]
    %v146 = vld [vmem:[#allocation7 + $0x70] sm:$0xff]
    %v147 = vld [vmem:[#allocation7 + $0x78] sm:$0xff]
    %v148 = vld [vmem:[%s4] sm:$0x1]
    %v150 = vlaneseq
    %v151 = vshrl.u32 %v150, 7
    %v152 = vsub.s32 0, %v151
    %v153 = vrot.slane %v148, %v152
    %155 = vmatprep.subr.mxu0 0.0
    %156 = vmatpush1.msra.mxu0 %v132
    %157 = vmatprep.subr.mxu0 0.0
    %158 = vmatpush1.msra.mxu0 %v133
    %159 = vmatprep.subr.mxu0 0.0
    %160 = vmatpush1.msra.mxu0 %v134
    %161 = vmatprep.subr.mxu0 0.0
    %162 = vmatpush1.msra.mxu0 %v135
    %163 = vmatprep.subr.mxu0 0.0
    %164 = vmatpush1.msra.mxu0 %v136
    %165 = vmatprep.subr.mxu0 0.0
    %166 = vmatpush1.msra.mxu0 %v137
    %167 = vmatprep.subr.mxu0 0.0
    %168 = vmatpush1.msra.mxu0 %v138
    %169 = vmatprep.subr.mxu0 0.0
    %170 = vmatpush1.msra.mxu0 %v139
    %171 = vmatprep.subr.mxu0 0.0
    %172 = vmatpush1.msra.mxu0 %v140
    %173 = vmatprep.subr.mxu0 0.0
    %174 = vmatpush1.msra.mxu0 %v141
    %175 = vmatprep.subr.mxu0 0.0
    %176 = vmatpush1.msra.mxu0 %v142
    %177 = vmatprep.subr.mxu0 0.0
    %178 = vmatpush1.msra.mxu0 %v143
    %179 = vmatprep.subr.mxu0 0.0
    %180 = vmatpush1.msra.mxu0 %v144
    %181 = vmatprep.subr.mxu0 0.0
    %182 = vmatpush1.msra.mxu0 %v145
    %183 = vmatprep.subr.mxu0 0.0
    %184 = vmatpush1.msra.mxu0 %v146
    %185 = vmatprep.subr.mxu0 0.0
    %186 = vmatpush1.msra.mxu0 %v147
    %187 = vmatprep.subr.mxu0 0.0
    %188 = vmatpush1.msra.mxu0 0.0
    %189 = vmatprep.subr.mxu0 0.0
    %190 = vmatpush1.msra.mxu0 0.0
    %191 = vmatprep.subr.mxu0 0.0
    %192 = vmatpush1.msra.mxu0 0.0
    %193 = vmatprep.subr.mxu0 0.0
    %194 = vmatpush1.msra.mxu0 0.0
    %195 = vmatprep.subr.mxu0 0.0
    %196 = vmatpush1.msra.mxu0 0.0
    %197 = vmatprep.subr.mxu0 0.0
    %198 = vmatpush1.msra.mxu0 0.0
    %199 = vmatprep.subr.mxu0 0.0
    %200 = vmatpush1.msra.mxu0 0.0
    %201 = vmatprep.subr.mxu0 0.0
    %202 = vmatpush1.msra.mxu0 0.0
    %203 = vmatprep.subr.mxu0 0.0
    %204 = vmatpush1.msra.mxu0 0.0
    %205 = vmatprep.subr.mxu0 0.0
    %206 = vmatpush1.msra.mxu0 0.0
    %207 = vmatprep.subr.mxu0 0.0
    %208 = vmatpush1.msra.mxu0 0.0
    %209 = vmatprep.subr.mxu0 0.0
    %210 = vmatpush1.msra.mxu0 0.0
    %211 = vmatprep.subr.mxu0 0.0
    %212 = vmatpush1.msra.mxu0 0.0
    %213 = vmatprep.subr.mxu0 0.0
    %214 = vmatpush1.msra.mxu0 0.0
    %215 = vmatprep.subr.mxu0 0.0
    %216 = vmatpush1.msra.mxu0 0.0
    %217 = vmatprep.subr.mxu0 0.0
    %218 = vmatpush1.msra.mxu0 0.0
    %219 = vmatprep.mubr.f32.mxu0 0.0
    %220 = vmatmul.mubr.f32.gmra.mrb[0].mxu0 %v130
    %v221 = vpop.f32.mrb[0].mxu0
    %v222 = vadd.f32 %v153, %v221
    %v223 = vpop.f32.mrb[0].mxu0
    %224 = vmatprep.mubr.f32.mxu0 0.0
    %225 = vmatmul.mubr.f32.gmra.mrb[0].mxu0 %v131
    %v226 = vpop.f32.mrb[0].mxu0
    %v227 = vadd.f32 %v153, %v226
    %v228 = vpop.f32.mrb[0].mxu0
    %229 = vdwg.mxu0
    %v230 = vmul.f32 %v222, 0.5
    %v231 = vmul.f32 %v227, 0.5
    %v232 = vmul.f32 %v222, 0.70710677
    %v233 = vmul.f32 %v227, 0.70710677
    %v234 = verf.f32.pop %v232
    %v235 = verf.f32.pop %v233
    %v236 = vadd.f32 %v234, 1.0
    %v237 = vadd.f32 %v235, 1.0
    %v238 = vmul.f32 %v230, %v236
    %v239 = vmul.f32 %v231, %v237
    %v240 = vld [vmem:[#allocation3] sm:$0xff]
    %v241 = vld [vmem:[#allocation3 + $0x8] sm:$0xff]
    %v242 = vld [vmem:[#allocation9] sm:$0xff]
    %v243 = vld [vmem:[#allocation9 + $0x8] sm:$0xff]
    %v244 = vld [vmem:[#allocation9 + $0x10] sm:$0xff]
    %v245 = vld [vmem:[#allocation9 + $0x18] sm:$0xff]
    %v246 = vld [vmem:[#allocation9 + $0x20] sm:$0xff]
    %v247 = vld [vmem:[#allocation9 + $0x28] sm:$0xff]
    %v248 = vld [vmem:[#allocation9 + $0x30] sm:$0xff]
    %v249 = vld [vmem:[#allocation9 + $0x38] sm:$0xff]
    %v250 = vld [vmem:[#allocation9 + $0x40] sm:$0xff]
    %v251 = vld [vmem:[#allocation9 + $0x48] sm:$0xff]
    %v252 = vld [vmem:[#allocation9 + $0x50] sm:$0xff]
    %v253 = vld [vmem:[#allocation9 + $0x58] sm:$0xff]
    %v254 = vld [vmem:[#allocation9 + $0x60] sm:$0xff]
    %v255 = vld [vmem:[#allocation9 + $0x68] sm:$0xff]
    %v256 = vld [vmem:[#allocation9 + $0x70] sm:$0xff]
    %v257 = vld [vmem:[#allocation9 + $0x78] sm:$0xff]
    %258 = vmatprep.subr.mxu0 0.0
    %259 = vmatpush1.msra.mxu0 %v242
    %260 = vmatprep.subr.mxu0 0.0
    %261 = vmatpush1.msra.mxu0 %v243
    %262 = vmatprep.subr.mxu0 0.0
    %263 = vmatpush1.msra.mxu0 %v244
    %264 = vmatprep.subr.mxu0 0.0
    %265 = vmatpush1.msra.mxu0 %v245
    %266 = vmatprep.subr.mxu0 0.0
    %267 = vmatpush1.msra.mxu0 %v246
    %268 = vmatprep.subr.mxu0 0.0
    %269 = vmatpush1.msra.mxu0 %v247
    %270 = vmatprep.subr.mxu0 0.0
    %271 = vmatpush1.msra.mxu0 %v248
    %272 = vmatprep.subr.mxu0 0.0
    %273 = vmatpush1.msra.mxu0 %v249
    %274 = vmatprep.subr.mxu0 0.0
    %275 = vmatpush1.msra.mxu0 %v250
    %276 = vmatprep.subr.mxu0 0.0
    %277 = vmatpush1.msra.mxu0 %v251
    %278 = vmatprep.subr.mxu0 0.0
    %279 = vmatpush1.msra.mxu0 %v252
    %280 = vmatprep.subr.mxu0 0.0
    %281 = vmatpush1.msra.mxu0 %v253
    %282 = vmatprep.subr.mxu0 0.0
    %283 = vmatpush1.msra.mxu0 %v254
    %284 = vmatprep.subr.mxu0 0.0
    %285 = vmatpush1.msra.mxu0 %v255
    %286 = vmatprep.subr.mxu0 0.0
    %287 = vmatpush1.msra.mxu0 %v256
    %288 = vmatprep.subr.mxu0 0.0
    %289 = vmatpush1.msra.mxu0 %v257
    %290 = vmatprep.subr.mxu0 0.0
    %291 = vmatpush1.msra.mxu0 0.0
    %292 = vmatprep.subr.mxu0 0.0
    %293 = vmatpush1.msra.mxu0 0.0
    %294 = vmatprep.subr.mxu0 0.0
    %295 = vmatpush1.msra.mxu0 0.0
    %296 = vmatprep.subr.mxu0 0.0
    %297 = vmatpush1.msra.mxu0 0.0
    %298 = vmatprep.subr.mxu0 0.0
    %299 = vmatpush1.msra.mxu0 0.0
    %300 = vmatprep.subr.mxu0 0.0
    %301 = vmatpush1.msra.mxu0 0.0
    %302 = vmatprep.subr.mxu0 0.0
    %303 = vmatpush1.msra.mxu0 0.0
    %304 = vmatprep.subr.mxu0 0.0
    %305 = vmatpush1.msra.mxu0 0.0
    %306 = vmatprep.subr.mxu0 0.0
    %307 = vmatpush1.msra.mxu0 0.0
    %308 = vmatprep.subr.mxu0 0.0
    %309 = vmatpush1.msra.mxu0 0.0
    %310 = vmatprep.subr.mxu0 0.0
    %311 = vmatpush1.msra.mxu0 0.0
    %312 = vmatprep.subr.mxu0 0.0
    %313 = vmatpush1.msra.mxu0 0.0
    %314 = vmatprep.subr.mxu0 0.0
    %315 = vmatpush1.msra.mxu0 0.0
    %316 = vmatprep.subr.mxu0 0.0
    %317 = vmatpush1.msra.mxu0 0.0
    %318 = vmatprep.subr.mxu0 0.0
    %319 = vmatpush1.msra.mxu0 0.0
    %320 = vmatprep.subr.mxu0 0.0
    %321 = vmatpush1.msra.mxu0 0.0
    %322 = vmatprep.mubr.f32.mxu0 0.0
    %323 = vmatmul.mubr.f32.gmra.mrb[0].mxu0 %v238
    %v324 = vpop.f32.mrb[0].mxu0
    %v325 = vadd.f32 0.0, %v324
    %v326 = vpop.f32.mrb[0].mxu0
    %327 = vmatprep.mubr.f32.mxu0 0.0
    %328 = vmatmul.mubr.f32.gmra.mrb[0].mxu0 %v239
    %v329 = vpop.f32.mrb[0].mxu0
    %v330 = vadd.f32 0.0, %v329
    %v331 = vpop.f32.mrb[0].mxu0
    %332 = vdwg.mxu0
    %v333 = vadd.f32 %v240, %v325
    %v334 = vadd.f32 %v241, %v330
    %335 = vst [vmem:[#allocation3] sm:$0xff] %v333
    %336 = vst [vmem:[#allocation3 + $0x8] sm:$0xff] %v334
    // Predicated region
    $region46: #{tpu_custom_call.1} parent=1 // pred_check
      %p337 = pneg %p68
    $region47: #{tpu_custom_call.1} parent=1 // pred_check_branch
      %339 = sbr.rel (%p337) target = $region49
    $region48: #{tpu_custom_call.1} parent=1 // pred_region
      %v340 = vld [vmem:[#allocation4] sm:$0xff]
      %v341 = vld [vmem:[#allocation4 + $0x8] sm:$0xff]
      %v342 = vld [vmem:[#allocation3] sm:$0xff]
      %v343 = vld [vmem:[#allocation3 + $0x8] sm:$0xff]
      %v344 = vadd.f32 %v340, %v342
      %v345 = vadd.f32 %v341, %v343
      %346 = vst [vmem:[#allocation10] sm:$0xff] %v344
      %347 = vst [vmem:[#allocation10 + $0x8] sm:$0xff] %v345
    $region49: #{tpu_custom_call.1} parent=1 // pred_fallthru
      _
    // Predicated region
    $region50: #{tpu_custom_call.1} parent=1 // pred_check
      _
    $region51: #{tpu_custom_call.1} parent=1 // pred_check_branch
      %349 = sbr.rel (0) target = $region53
    $region52: #{tpu_custom_call.1} parent=1 // pred_region
      %s351 = ssub.s32 256, 256
      %352 = vsyncadd [#allocation6], %s351
      %s353 = sshll.u32 [#allocation10], 4
      %s354 = int_to_ptr.vmem [resolvable:$true] %s353
      %359 = dma.vmem_to_hbm [thread:$0]  %s354, 256, %s7, [#allocation6], 128, 128, 8
    $region53: #{tpu_custom_call.1} parent=1 // pred_fallthru
      _
    // Predicated region
    $region54: #{tpu_custom_call.1} parent=1 // pred_check
      _
    $region55: #{tpu_custom_call.1} parent=1 // pred_check_branch
      %361 = sbr.rel (0) target = $region57
    $region56: #{tpu_custom_call.1} parent=1 // pred_region
      %362 = dma.done [#allocation6], 256
    $region57: #{tpu_custom_call.1} parent=1 // pred_fallthru
      _
    %363 = vsyncpa [#allocation5], 1
    %364 = vsyncpa [#allocation8], 1
    %365 = vsyncpa [#allocation6], 1

</llo_original>
